<compile_context>
chip_gen: v7x
topology: tpu7x:2x2x1
jax: 0.10.0
libtpu: 0.0.40
codegen_flags: <defaults>
</compile_context>

<pallas_src>
import jax
import jax.numpy as jnp
from jax.experimental import pallas as pl
from jax.experimental.pallas import tpu as pltpu

EPS = 1e-5


def _round_up(x, m):
    return ((x + m - 1) // m) * m


def _fr_stats_kernel(x_ref, w_ref, sum_ref, sq_ref):
    # x_ref: (TN, C_in, TP) downsampled pre-ReLU pixels (pixels on lanes)
    # w_ref: (C_out, C_in) stacked [w1; w2]
    # sum_ref / sq_ref: (C_out, 1) f32 accumulators, VMEM-resident across the grid
    @pl.when((pl.program_id(0) == 0) & (pl.program_id(1) == 0))
    def _():
        sum_ref[...] = jnp.zeros_like(sum_ref)
        sq_ref[...] = jnp.zeros_like(sq_ref)

    w = w_ref[...]
    s = jnp.zeros_like(sum_ref)
    q = jnp.zeros_like(sq_ref)
    for b in range(x_ref.shape[0]):                                # static unroll
        h = jnp.maximum(x_ref[b], 0.0).astype(w.dtype)             # ReLU (VPU)
        y = jnp.dot(w, h, preferred_element_type=jnp.float32)      # (C_out, TP) MXU
        s = s + jnp.sum(y, axis=1, keepdims=True)                  # XLU reduce
        q = q + jnp.sum(y * y, axis=1, keepdims=True)
    sum_ref[...] += s
    sq_ref[...] += q


def _fr_norm_kernel(x_ref, w_ref, scale_ref, shift_ref, o_ref):
    # scale/shift: (C_out, 1) precomputed gamma*rsqrt(var+eps) and beta-mean*scale,
    # so the per-tile epilogue is a single broadcast FMA per output channel.
    w = w_ref[...]
    scale = scale_ref[...]
    shift = shift_ref[...]
    for b in range(x_ref.shape[0]):
        h = jnp.maximum(x_ref[b], 0.0).astype(w.dtype)
        y = jnp.dot(w, h, preferred_element_type=jnp.float32)      # (C_out, TP)
        o_ref[b] = (y * scale + shift).astype(o_ref.dtype)         # lane-dense store


def factorized_reduce(x, w1, w2, gamma, beta, *, tile_p=2048,
                      vmem_budget_bytes=8 << 20,
                      matmul_dtype=None, out_dtype=None):
    """x: (N, C_in, H, W) NCHW.  w1, w2: (C_out//2, C_in, 1, 1).  Returns NCHW."""
    N, C_in, H, W = x.shape
    C_half = w1.shape[0]
    C_out = 2 * C_half

    mm_dtype = matmul_dtype if matmul_dtype is not None else x.dtype
    out_dtype = out_dtype if out_dtype is not None else x.dtype

    # Stride-2 / 1x1 / no-pad conv reads only even-indexed pixels.  The reshape
    # to (N, C_in, P) preserves NCHW memory order (no transpose on the wrapper
    # side, in contrast to a (C, N*P) layout).
    xd = x[:, :, ::2, ::2]                                  # (N, C_in, Ho, Wo)
    Ho, Wo = xd.shape[2], xd.shape[3]
    P = Ho * Wo
    x_cm = xd.reshape(N, C_in, P).astype(mm_dtype)

    # Pixel-axis tiling: pad to a multiple of 128 (lane-dense); padded zeros
    # contribute nothing to the BN sums and we divide by the true count.
    P128 = _round_up(P, 128)
    TP = min(_round_up(tile_p, 128), P128)
    P_pad = _round_up(P, TP)
    if P_pad != P:
        x_cm = jnp.pad(x_cm, ((0, 0), (0, 0), (0, P_pad - P)))
    num_p_tiles = P_pad // TP

    # Batch-axis tiling: largest divisor of N (capped for unroll size) whose
    # double-buffered input+output tiles stay inside the VMEM budget.  This
    # keeps DMAs large / grid steps few even when Ho*Wo is small.
    mm_bytes = jnp.dtype(mm_dtype).itemsize
    out_bytes = max(jnp.dtype(out_dtype).itemsize, 4)
    per_batch_bytes = 2 * TP * (C_in * mm_bytes + C_out * out_bytes)
    TN = 1
    for d in range(min(N, 8), 0, -1):
        if N % d == 0 and d * per_batch_bytes <= vmem_budget_bytes:
            TN = d
            break
    num_n_blocks = N // TN

    # Both 1x1 convs as one stacked weight matrix: rows = output channels.
    w_mat = jnp.concatenate(
        [w1.reshape(C_half, C_in), w2.reshape(C_half, C_in)], axis=0
    ).astype(mm_dtype)                                      # (C_out, C_in)

    # ---- Pass 1: per-channel sum / sum-of-squares over all N*P pixels --------
    s_sum, s_sq = pl.pallas_call(
        _fr_stats_kernel,
        grid=(num_n_blocks, num_p_tiles),
        in_specs=[
            pl.BlockSpec((TN, C_in, TP), lambda n, t: (n, 0, t)),
            pl.BlockSpec((C_out, C_in), lambda n, t: (0, 0)),
        ],
        out_specs=[
            pl.BlockSpec((C_out, 1), lambda n, t: (0, 0)),
            pl.BlockSpec((C_out, 1), lambda n, t: (0, 0)),
        ],
        out_shape=[
            jax.ShapeDtypeStruct((C_out, 1), jnp.float32),
            jax.ShapeDtypeStruct((C_out, 1), jnp.float32),
        ],
        compiler_params=pltpu.CompilerParams(
            dimension_semantics=("arbitrary", "arbitrary")),
    )(x_cm, w_mat)

    # Fold BN (batch stats, biased variance) + affine into one scale/shift pair.
    count = jnp.float32(N * P)
    mean = s_sum[:, 0] / count
    var = jnp.maximum(s_sq[:, 0] / count - mean * mean, 0.0)
    inv = jax.lax.rsqrt(var + EPS)
    scale = gamma.astype(jnp.float32) * inv                 # (C_out,)
    shift = beta.astype(jnp.float32) - mean * scale         # (C_out,)

    # ---- Pass 2: recompute conv per tile, apply scale/shift, lane-dense store -
    y = pl.pallas_call(
        _fr_norm_kernel,
        grid=(num_n_blocks, num_p_tiles),
        in_specs=[
            pl.BlockSpec((TN, C_in, TP), lambda n, t: (n, 0, t)),
            pl.BlockSpec((C_out, C_in), lambda n, t: (0, 0)),
            pl.BlockSpec((C_out, 1), lambda n, t: (0, 0)),
            pl.BlockSpec((C_out, 1), lambda n, t: (0, 0)),
        ],
        out_specs=pl.BlockSpec((TN, C_out, TP), lambda n, t: (n, 0, t)),
        out_shape=jax.ShapeDtypeStruct((N, C_out, P_pad), out_dtype),
        compiler_params=pltpu.CompilerParams(
            dimension_semantics=("parallel", "parallel")),
    )(x_cm, w_mat, scale.reshape(C_out, 1), shift.reshape(C_out, 1))

    if P_pad != P:
        y = y[:, :, :P]
    # Output is already in NCHW order: just a free reshape back to 4-D.
    return y.reshape(N, C_out, Ho, Wo)


def _reference(x, w1, w2, gamma, beta):
    """Pure-JAX reference matching the PyTorch module in training mode."""
    h = jnp.maximum(x, 0.0)
    hd = h[:, :, ::2, ::2]

    def conv(w):
        return jnp.einsum("ncij,oc->noij", hd, w.reshape(w.shape[0], w.shape[1]))

    y = jnp.concatenate([conv(w1), conv(w2)], axis=1)
    mean = y.mean(axis=(0, 2, 3), keepdims=True)
    var = ((y - mean) ** 2).mean(axis=(0, 2, 3), keepdims=True)
    y_hat = (y - mean) / jnp.sqrt(var + EPS)
    return gamma.reshape(1, -1, 1, 1) * y_hat + beta.reshape(1, -1, 1, 1)


if __name__ == "__main__":
    N, C_in, H, W = 2, 4, 16, 16
    C_out = 8
    C_half = C_out // 2

    key = jax.random.PRNGKey(0)
    kx, k1, k2, kg, kb = jax.random.split(key, 5)

    x = jax.random.normal(kx, (N, C_in, H, W), dtype=jnp.float32)
    # Shapes match nn.Conv2d(C_in, C_out//2, 1, stride=2, bias=False).
    w1 = jax.random.normal(k1, (C_half, C_in, 1, 1), dtype=jnp.float32) * 0.1
    w2 = jax.random.normal(k2, (C_half, C_in, 1, 1), dtype=jnp.float32) * 0.1
    # BatchNorm2d affine parameters (non-trivial to exercise the scale/shift path).
    gamma = 1.0 + 0.1 * jax.random.normal(kg, (C_out,), dtype=jnp.float32)
    beta = 0.05 * jax.random.normal(kb, (C_out,), dtype=jnp.float32)

    fr = jax.jit(factorized_reduce)
    out = fr(x, w1, w2, gamma, beta)
    out = jax.block_until_ready(out)

    ref = _reference(x, w1, w2, gamma, beta)
    assert out.shape == (N, C_out, H // 2, W // 2), out.shape
    assert jnp.allclose(out, ref, rtol=1e-4, atol=1e-4), \
        float(jnp.max(jnp.abs(out - ref)))

    print("KERNEL_OK")
</pallas_src>

<mosaic_0001>
module attributes {stable_mosaic.version = 11 : i64} {
  func.func @_fr_stats_kernel(%arg0: i32, %arg1: i32, %arg2: memref<2x4x128xf32, #tpu.memory_space<vmem>>, %arg3: memref<8x4xf32, #tpu.memory_space<vmem>>, %arg4: memref<8x1xf32, #tpu.memory_space<vmem>>, %arg5: memref<8x1xf32, #tpu.memory_space<vmem>>) attributes {dimension_semantics = [#tpu.dimension_semantics<arbitrary>, #tpu.dimension_semantics<arbitrary>], iteration_bounds = array<i64: 1, 1>, scalar_prefetch = 0 : i64, scratch_operands = 0 : i64, tpu.core_type = #tpu.core_type<tc>, window_params = [{transform_indices = @transform_0, window_bounds = array<i64: 2, 4, 128>}, {pipeline_mode = #tpu.pipeline_mode<synchronous>, transform_indices = @transform_1, window_bounds = array<i64: 8, 4>}, {pipeline_mode = #tpu.pipeline_mode<synchronous>, transform_indices = @transform_2, window_bounds = array<i64: 8, 1>}, {pipeline_mode = #tpu.pipeline_mode<synchronous>, transform_indices = @transform_3, window_bounds = array<i64: 8, 1>}]} {
    %c0_i32 = arith.constant 0 : i32
    %0 = arith.cmpi eq, %arg0, %c0_i32 : i32
    %c0_i32_0 = arith.constant 0 : i32
    %1 = arith.cmpi eq, %arg1, %c0_i32_0 : i32
    %2 = arith.andi %0, %1 : i1
    %3 = arith.extui %2 : i1 to i32
    %c0_i32_1 = arith.constant 0 : i32
    %4 = arith.cmpi ne, %3, %c0_i32_1 : i32
    scf.if %4 {
      %cst_25 = arith.constant 0.000000e+00 : f32
      %38 = vector.broadcast %cst_25 : f32 to vector<8x1xf32>
      %c0_26 = arith.constant 0 : index
      %c0_27 = arith.constant 0 : index
      %39 = vector.load %arg4[%c0_26, %c0_27] : memref<8x1xf32, #tpu.memory_space<vmem>>, vector<8x1xf32>
      tpu.vector_store %arg4[%c0_26, %c0_27], %38 {strides = array<i32>} : memref<8x1xf32, #tpu.memory_space<vmem>>, vector<8x1xf32>,
      %cst_28 = arith.constant 0.000000e+00 : f32
      %40 = vector.broadcast %cst_28 : f32 to vector<8x1xf32>
      %c0_29 = arith.constant 0 : index
      %c0_30 = arith.constant 0 : index
      %41 = vector.load %arg5[%c0_29, %c0_30] : memref<8x1xf32, #tpu.memory_space<vmem>>, vector<8x1xf32>
      tpu.vector_store %arg5[%c0_29, %c0_30], %40 {strides = array<i32>} : memref<8x1xf32, #tpu.memory_space<vmem>>, vector<8x1xf32>,
    } else {
    }
    %c0 = arith.constant 0 : index
    %c0_2 = arith.constant 0 : index
    %5 = vector.load %arg3[%c0, %c0_2] : memref<8x4xf32, #tpu.memory_space<vmem>>, vector<8x4xf32>
    %cst = arith.constant 0.000000e+00 : f32
    %6 = vector.broadcast %cst : f32 to vector<8x1xf32>
    %cst_3 = arith.constant 0.000000e+00 : f32
    %7 = vector.broadcast %cst_3 : f32 to vector<8x1xf32>
    %c0_4 = arith.constant 0 : index
    %c0_5 = arith.constant 0 : index
    %c0_6 = arith.constant 0 : index
    %8 = vector.load %arg2[%c0_4, %c0_5, %c0_6] : memref<2x4x128xf32, #tpu.memory_space<vmem>>, vector<1x4x128xf32>
    %9 = vector.shape_cast %8 : vector<1x4x128xf32> to vector<4x128xf32>
    %cst_7 = arith.constant 0.000000e+00 : f32
    %10 = vector.broadcast %cst_7 : f32 to vector<4x128xf32>
    %11 = arith.maximumf %9, %10 : vector<4x128xf32>
    %cst_8 = arith.constant dense<0.000000e+00> : vector<8x128xf32>
    %12 = tpu.matmul %5, %11, %cst_8 {dimension_numbers = #tpu.dot_dimension_numbers<[1], [0], [0], [1], [0, 0, 1, 1], [], []>} : vector<8x4xf32>, vector<4x128xf32>, vector<8x128xf32> -> vector<8x128xf32>
    %cst_9 = arith.constant dense<0.000000e+00> : vector<8xf32>
    %13 = vector.multi_reduction <add>, %12, %cst_9 [1] : vector<8x128xf32> to vector<8xf32>
    %14 = vector.shape_cast %13 : vector<8xf32> to vector<8x1xf32>
    %15 = arith.addf %6, %14 : vector<8x1xf32>
    %16 = arith.mulf %12, %12 : vector<8x128xf32>
    %cst_10 = arith.constant dense<0.000000e+00> : vector<8xf32>
    %17 = vector.multi_reduction <add>, %16, %cst_10 [1] : vector<8x128xf32> to vector<8xf32>
    %18 = vector.shape_cast %17 : vector<8xf32> to vector<8x1xf32>
    %19 = arith.addf %7, %18 : vector<8x1xf32>
    %c1 = arith.constant 1 : index
    %c0_11 = arith.constant 0 : index
    %c0_12 = arith.constant 0 : index
    %20 = vector.load %arg2[%c1, %c0_11, %c0_12] : memref<2x4x128xf32, #tpu.memory_space<vmem>>, vector<1x4x128xf32>
    %21 = vector.shape_cast %20 : vector<1x4x128xf32> to vector<4x128xf32>
    %cst_13 = arith.constant 0.000000e+00 : f32
    %22 = vector.broadcast %cst_13 : f32 to vector<4x128xf32>
    %23 = arith.maximumf %21, %22 : vector<4x128xf32>
    %cst_14 = arith.constant dense<0.000000e+00> : vector<8x128xf32>
    %24 = tpu.matmul %5, %23, %cst_14 {dimension_numbers = #tpu.dot_dimension_numbers<[1], [0], [0], [1], [0, 0, 1, 1], [], []>} : vector<8x4xf32>, vector<4x128xf32>, vector<8x128xf32> -> vector<8x128xf32>
    %cst_15 = arith.constant dense<0.000000e+00> : vector<8xf32>
    %25 = vector.multi_reduction <add>, %24, %cst_15 [1] : vector<8x128xf32> to vector<8xf32>
    %26 = vector.shape_cast %25 : vector<8xf32> to vector<8x1xf32>
    %27 = arith.addf %15, %26 : vector<8x1xf32>
    %28 = arith.mulf %24, %24 : vector<8x128xf32>
    %cst_16 = arith.constant dense<0.000000e+00> : vector<8xf32>
    %29 = vector.multi_reduction <add>, %28, %cst_16 [1] : vector<8x128xf32> to vector<8xf32>
    %30 = vector.shape_cast %29 : vector<8xf32> to vector<8x1xf32>
    %31 = arith.addf %19, %30 : vector<8x1xf32>
    %c0_17 = arith.constant 0 : index
    %c0_18 = arith.constant 0 : index
    %32 = vector.load %arg4[%c0_17, %c0_18] : memref<8x1xf32, #tpu.memory_space<vmem>>, vector<8x1xf32>
    %33 = arith.addf %32, %27 : vector<8x1xf32>
    %c0_19 = arith.constant 0 : index
    %c0_20 = arith.constant 0 : index
    %34 = vector.load %arg4[%c0_19, %c0_20] : memref<8x1xf32, #tpu.memory_space<vmem>>, vector<8x1xf32>
    tpu.vector_store %arg4[%c0_19, %c0_20], %33 {strides = array<i32>} : memref<8x1xf32, #tpu.memory_space<vmem>>, vector<8x1xf32>,
    %c0_21 = arith.constant 0 : index
    %c0_22 = arith.constant 0 : index
    %35 = vector.load %arg5[%c0_21, %c0_22] : memref<8x1xf32, #tpu.memory_space<vmem>>, vector<8x1xf32>
    %36 = arith.addf %35, %31 : vector<8x1xf32>
    %c0_23 = arith.constant 0 : index
    %c0_24 = arith.constant 0 : index
    %37 = vector.load %arg5[%c0_23, %c0_24] : memref<8x1xf32, #tpu.memory_space<vmem>>, vector<8x1xf32>
    tpu.vector_store %arg5[%c0_23, %c0_24], %36 {strides = array<i32>} : memref<8x1xf32, #tpu.memory_space<vmem>>, vector<8x1xf32>,
    return
  }
  func.func @transform_0(%arg0: i32, %arg1: i32) -> (i32, i32, i32) {
    %c0_i32 = arith.constant 0 : i32
    %c0_i32_0 = arith.constant 0 : i32
    return %arg0, %c0_i32, %arg1 : i32, i32, i32
  }
  func.func @transform_1(%arg0: i32, %arg1: i32) -> (i32, i32) {
    %c0_i32 = arith.constant 0 : i32
    %c0_i32_0 = arith.constant 0 : i32
    %c0_i32_1 = arith.constant 0 : i32
    return %c0_i32, %c0_i32_0 : i32, i32
  }
  func.func @transform_2(%arg0: i32, %arg1: i32) -> (i32, i32) {
    %c0_i32 = arith.constant 0 : i32
    %c0_i32_0 = arith.constant 0 : i32
    %c0_i32_1 = arith.constant 0 : i32
    return %c0_i32, %c0_i32_0 : i32, i32
  }
  func.func @transform_3(%arg0: i32, %arg1: i32) -> (i32, i32) {
    %c0_i32 = arith.constant 0 : i32
    %c0_i32_0 = arith.constant 0 : i32
    %c0_i32_1 = arith.constant 0 : i32
    return %c0_i32, %c0_i32_0 : i32, i32
  }
}

module attributes {stable_mosaic.version = 11 : i64} {
  func.func @_fr_norm_kernel(%arg0: i32, %arg1: i32, %arg2: memref<2x4x128xf32, #tpu.memory_space<vmem>>, %arg3: memref<8x4xf32, #tpu.memory_space<vmem>>, %arg4: memref<8x1xf32, #tpu.memory_space<vmem>>, %arg5: memref<8x1xf32, #tpu.memory_space<vmem>>, %arg6: memref<2x8x128xf32, #tpu.memory_space<vmem>>) attributes {dimension_semantics = [#tpu.dimension_semantics<parallel>, #tpu.dimension_semantics<parallel>], iteration_bounds = array<i64: 1, 1>, scalar_prefetch = 0 : i64, scratch_operands = 0 : i64, tpu.core_type = #tpu.core_type<tc>, window_params = [{transform_indices = @transform_0, window_bounds = array<i64: 2, 4, 128>}, {pipeline_mode = #tpu.pipeline_mode<synchronous>, transform_indices = @transform_1, window_bounds = array<i64: 8, 4>}, {pipeline_mode = #tpu.pipeline_mode<synchronous>, transform_indices = @transform_2, window_bounds = array<i64: 8, 1>}, {pipeline_mode = #tpu.pipeline_mode<synchronous>, transform_indices = @transform_3, window_bounds = array<i64: 8, 1>}, {transform_indices = @transform_4, window_bounds = array<i64: 2, 8, 128>}]} {
    %c0 = arith.constant 0 : index
    %c0_0 = arith.constant 0 : index
    %0 = vector.load %arg3[%c0, %c0_0] : memref<8x4xf32, #tpu.memory_space<vmem>>, vector<8x4xf32>
    %c0_1 = arith.constant 0 : index
    %c0_2 = arith.constant 0 : index
    %1 = vector.load %arg4[%c0_1, %c0_2] : memref<8x1xf32, #tpu.memory_space<vmem>>, vector<8x1xf32>
    %c0_3 = arith.constant 0 : index
    %c0_4 = arith.constant 0 : index
    %2 = vector.load %arg5[%c0_3, %c0_4] : memref<8x1xf32, #tpu.memory_space<vmem>>, vector<8x1xf32>
    %c0_5 = arith.constant 0 : index
    %c0_6 = arith.constant 0 : index
    %c0_7 = arith.constant 0 : index
    %3 = vector.load %arg2[%c0_5, %c0_6, %c0_7] : memref<2x4x128xf32, #tpu.memory_space<vmem>>, vector<1x4x128xf32>
    %4 = vector.shape_cast %3 : vector<1x4x128xf32> to vector<4x128xf32>
    %cst = arith.constant 0.000000e+00 : f32
    %5 = vector.broadcast %cst : f32 to vector<4x128xf32>
    %6 = arith.maximumf %4, %5 : vector<4x128xf32>
    %cst_8 = arith.constant dense<0.000000e+00> : vector<8x128xf32>
    %7 = tpu.matmul %0, %6, %cst_8 {dimension_numbers = #tpu.dot_dimension_numbers<[1], [0], [0], [1], [0, 0, 1, 1], [], []>} : vector<8x4xf32>, vector<4x128xf32>, vector<8x128xf32> -> vector<8x128xf32>
    %8 = vector.broadcast %1 : vector<8x1xf32> to vector<8x128xf32>
    %9 = arith.mulf %7, %8 : vector<8x128xf32>
    %10 = vector.broadcast %2 : vector<8x1xf32> to vector<8x128xf32>
    %11 = arith.addf %9, %10 : vector<8x128xf32>
    %c0_9 = arith.constant 0 : index
    %c0_10 = arith.constant 0 : index
    %c0_11 = arith.constant 0 : index
    %12 = vector.load %arg6[%c0_9, %c0_10, %c0_11] : memref<2x8x128xf32, #tpu.memory_space<vmem>>, vector<1x8x128xf32>
    %13 = vector.shape_cast %12 : vector<1x8x128xf32> to vector<8x128xf32>
    %14 = vector.shape_cast %11 : vector<8x128xf32> to vector<1x8x128xf32>
    tpu.vector_store %arg6[%c0_9, %c0_10, %c0_11], %14 {strides = array<i32>} : memref<2x8x128xf32, #tpu.memory_space<vmem>>, vector<1x8x128xf32>,
    %c1 = arith.constant 1 : index
    %c0_12 = arith.constant 0 : index
    %c0_13 = arith.constant 0 : index
    %15 = vector.load %arg2[%c1, %c0_12, %c0_13] : memref<2x4x128xf32, #tpu.memory_space<vmem>>, vector<1x4x128xf32>
    %16 = vector.shape_cast %15 : vector<1x4x128xf32> to vector<4x128xf32>
    %cst_14 = arith.constant 0.000000e+00 : f32
    %17 = vector.broadcast %cst_14 : f32 to vector<4x128xf32>
    %18 = arith.maximumf %16, %17 : vector<4x128xf32>
    %cst_15 = arith.constant dense<0.000000e+00> : vector<8x128xf32>
    %19 = tpu.matmul %0, %18, %cst_15 {dimension_numbers = #tpu.dot_dimension_numbers<[1], [0], [0], [1], [0, 0, 1, 1], [], []>} : vector<8x4xf32>, vector<4x128xf32>, vector<8x128xf32> -> vector<8x128xf32>
    %20 = vector.broadcast %1 : vector<8x1xf32> to vector<8x128xf32>
    %21 = arith.mulf %19, %20 : vector<8x128xf32>
    %22 = vector.broadcast %2 : vector<8x1xf32> to vector<8x128xf32>
    %23 = arith.addf %21, %22 : vector<8x128xf32>
    %c1_16 = arith.constant 1 : index
    %c0_17 = arith.constant 0 : index
    %c0_18 = arith.constant 0 : index
    %24 = vector.load %arg6[%c1_16, %c0_17, %c0_18] : memref<2x8x128xf32, #tpu.memory_space<vmem>>, vector<1x8x128xf32>
    %25 = vector.shape_cast %24 : vector<1x8x128xf32> to vector<8x128xf32>
    %26 = vector.shape_cast %23 : vector<8x128xf32> to vector<1x8x128xf32>
    tpu.vector_store %arg6[%c1_16, %c0_17, %c0_18], %26 {strides = array<i32>} : memref<2x8x128xf32, #tpu.memory_space<vmem>>, vector<1x8x128xf32>,
    return
  }
  func.func @transform_0(%arg0: i32, %arg1: i32) -> (i32, i32, i32) {
    %c0_i32 = arith.constant 0 : i32
    %c0_i32_0 = arith.constant 0 : i32
    return %arg0, %c0_i32, %arg1 : i32, i32, i32
  }
  func.func @transform_1(%arg0: i32, %arg1: i32) -> (i32, i32) {
    %c0_i32 = arith.constant 0 : i32
    %c0_i32_0 = arith.constant 0 : i32
    %c0_i32_1 = arith.constant 0 : i32
    return %c0_i32, %c0_i32_0 : i32, i32
  }
  func.func @transform_2(%arg0: i32, %arg1: i32) -> (i32, i32) {
    %c0_i32 = arith.constant 0 : i32
    %c0_i32_0 = arith.constant 0 : i32
    %c0_i32_1 = arith.constant 0 : i32
    return %c0_i32, %c0_i32_0 : i32, i32
  }
  func.func @transform_3(%arg0: i32, %arg1: i32) -> (i32, i32) {
    %c0_i32 = arith.constant 0 : i32
    %c0_i32_0 = arith.constant 0 : i32
    %c0_i32_1 = arith.constant 0 : i32
    return %c0_i32, %c0_i32_0 : i32, i32
  }
  func.func @transform_4(%arg0: i32, %arg1: i32) -> (i32, i32, i32) {
    %c0_i32 = arith.constant 0 : i32
    %c0_i32_0 = arith.constant 0 : i32
    return %arg0, %c0_i32, %arg1 : i32, i32, i32
  }
}

</mosaic_0001>

<llo_original>
// kernel: factorized_reduce.2
$region0: #{factorized_reduce.2}
  #allocation0 [shape = 'u32[]', space=smem, size = 0x4, offset = 0x4, fixed_abs, tag = 'smem constant byte address 0x4 - core index']
  #allocation1 [shape = 'u32[144,128]{1,0:T(1,128)}', space=vmem, size = 0x12000, scoped, tag = 'internal scratch']
  %s0 = inlined_call_operand.vmem [shape: f32[2,4,128], index: 0, kind: input, shape index: {}]
  %s1 = inlined_call_operand.vmem [shape: f32[8,4], index: 1, kind: input, shape index: {}]
  %s2 = inlined_call_operand.vmem [shape: f32[8,1], index: 2, kind: output, shape index: {0}]
  %s3 = inlined_call_operand.vmem [shape: f32[8,1], index: 3, kind: output, shape index: {1}]
  %4 = xla_tuple %s2, %s3
  %s5 = sld [smem:[#allocation0]]
  $region30: #{factorized_reduce.2} parent=0
    _
  %s7 = ssub.s32 1, %s5
  %s8 = scalar_select 0, %s7, %s5
  // Predicated region
  $region2: #{factorized_reduce.2} parent=0 // pred_check
    _
  $region3: #{factorized_reduce.2} parent=0 // pred_check_branch
    %10 = sbr.rel (0) target = $region5
  $region4: #{factorized_reduce.2} parent=0 // pred_region
    _
  $region5: #{factorized_reduce.2} parent=0 // pred_fallthru
    _
  // Predicated region
  $region6: #{factorized_reduce.2} parent=0 // pred_check
    _
  $region7: #{factorized_reduce.2} parent=0 // pred_check_branch
    %12 = sbr.rel (0) target = $region9
  $region8: #{factorized_reduce.2} parent=0 // pred_region
    _
  $region9: #{factorized_reduce.2} parent=0 // pred_fallthru
    _
  %p13 = scmp.eq.s32.totalorder 0, 0
  %p14 = scmp.eq.s32.totalorder 0, 0
  %p15 = pnand %p13, %p14
  %p16 = pneg %p15
  // Predicated region
  $region10: #{factorized_reduce.2} parent=0 // pred_check
    _
  $region11: #{factorized_reduce.2} parent=0 // pred_check_branch
    %18 = sbr.rel (%p15) target = $region13
  $region12: #{factorized_reduce.2} parent=0 // pred_region
    %vm19 = vcmask 7168
    %20 = vst.msk [vmem:[%s2] sm:$0xff] %vm19, 0.0
    %21 = vst.msk [vmem:[%s3] sm:$0xff] %vm19, 0.0
  $region13: #{factorized_reduce.2} parent=0 // pred_fallthru
    _
  %v22 = vld [vmem:[%s1] sm:$0xff]
  %v23 = vld [vmem:[%s0] sm:$0xf]
  %v24 = vmax.f32 %v23, 0.0
  %vm25 = vcmask 31744
  %v27 = vsel %vm25, %v22, 0
  %vm29 = vcmask 1043456
  %v31 = vsel %vm29, %v24, 0
  %33 = vmatprep.subr.mxu0 0.0
  %34 = vmatpush1.msra.mxu0 %v31
  %35 = vmatprep.subr.mxu0 0.0
  %36 = vmatpush1.msra.mxu0 0.0
  %37 = vmatprep.subr.mxu0 0.0
  %38 = vmatpush1.msra.mxu0 0.0
  %39 = vmatprep.subr.mxu0 0.0
  %40 = vmatpush1.msra.mxu0 0.0
  %41 = vmatprep.subr.mxu0 0.0
  %42 = vmatpush1.msra.mxu0 0.0
  %43 = vmatprep.subr.mxu0 0.0
  %44 = vmatpush1.msra.mxu0 0.0
  %45 = vmatprep.subr.mxu0 0.0
  %46 = vmatpush1.msra.mxu0 0.0
  %47 = vmatprep.subr.mxu0 0.0
  %48 = vmatpush1.msra.mxu0 0.0
  %49 = vmatprep.subr.mxu0 0.0
  %50 = vmatpush1.msra.mxu0 0.0
  %51 = vmatprep.subr.mxu0 0.0
  %52 = vmatpush1.msra.mxu0 0.0
  %53 = vmatprep.subr.mxu0 0.0
  %54 = vmatpush1.msra.mxu0 0.0
  %55 = vmatprep.subr.mxu0 0.0
  %56 = vmatpush1.msra.mxu0 0.0
  %57 = vmatprep.subr.mxu0 0.0
  %58 = vmatpush1.msra.mxu0 0.0
  %59 = vmatprep.subr.mxu0 0.0
  %60 = vmatpush1.msra.mxu0 0.0
  %61 = vmatprep.subr.mxu0 0.0
  %62 = vmatpush1.msra.mxu0 0.0
  %63 = vmatprep.subr.mxu0 0.0
  %64 = vmatpush1.msra.mxu0 0.0
  %65 = vmatprep.subr.mxu0 0.0
  %66 = vmatpush1.msra.mxu0 0.0
  %67 = vmatprep.subr.mxu0 0.0
  %68 = vmatpush1.msra.mxu0 0.0
  %69 = vmatprep.subr.mxu0 0.0
  %70 = vmatpush1.msra.mxu0 0.0
  %71 = vmatprep.subr.mxu0 0.0
  %72 = vmatpush1.msra.mxu0 0.0
  %73 = vmatprep.subr.mxu0 0.0
  %74 = vmatpush1.msra.mxu0 0.0
  %75 = vmatprep.subr.mxu0 0.0
  %76 = vmatpush1.msra.mxu0 0.0
  %77 = vmatprep.subr.mxu0 0.0
  %78 = vmatpush1.msra.mxu0 0.0
  %79 = vmatprep.subr.mxu0 0.0
  %80 = vmatpush1.msra.mxu0 0.0
  %81 = vmatprep.subr.mxu0 0.0
  %82 = vmatpush1.msra.mxu0 0.0
  %83 = vmatprep.subr.mxu0 0.0
  %84 = vmatpush1.msra.mxu0 0.0
  %85 = vmatprep.subr.mxu0 0.0
  %86 = vmatpush1.msra.mxu0 0.0
  %87 = vmatprep.subr.mxu0 0.0
  %88 = vmatpush1.msra.mxu0 0.0
  %89 = vmatprep.subr.mxu0 0.0
  %90 = vmatpush1.msra.mxu0 0.0
  %91 = vmatprep.subr.mxu0 0.0
  %92 = vmatpush1.msra.mxu0 0.0
  %93 = vmatprep.subr.mxu0 0.0
  %94 = vmatpush1.msra.mxu0 0.0
  %95 = vmatprep.subr.mxu0 0.0
  %96 = vmatpush1.msra.mxu0 0.0
  %97 = vmatprep.mubr.f32.mxu0 0.0
  %98 = vmatmul.mubr.f32.gmra.mrb[0].mxu0 %v27
  %v99 = vpop.f32.mrb[0].mxu0
  %v100 = vadd.f32 0.0, %v99
  %v101 = vpop.f32.mrb[0].mxu0
  %102 = vdwg.mxu0
  %103 = vadd.xlane.f32.xlu0 %v100
  %v104 = vpop.xlane.xlu0 %103
  %v105 = vadd.f32 %v104, 0.0
  %v106 = vmul.f32 %v100, %v100
  %107 = vadd.xlane.f32.xlu0 %v106
  %v108 = vpop.xlane.xlu0 %107
  %v109 = vadd.f32 %v108, 0.0
  %s110 = scalar_lea.vmem %s0, 4
  %v111 = vld [vmem:[%s110] sm:$0xf]
  %v112 = vmax.f32 %v111, 0.0
  %v114 = vsel %vm29, %v112, 0
  %116 = vmatprep.subr.mxu0 0.0
  %117 = vmatpush1.msra.mxu0 %v114
  %118 = vmatprep.subr.mxu0 0.0
  %119 = vmatpush1.msra.mxu0 0.0
  %120 = vmatprep.subr.mxu0 0.0
  %121 = vmatpush1.msra.mxu0 0.0
  %122 = vmatprep.subr.mxu0 0.0
  %123 = vmatpush1.msra.mxu0 0.0
  %124 = vmatprep.subr.mxu0 0.0
  %125 = vmatpush1.msra.mxu0 0.0
  %126 = vmatprep.subr.mxu0 0.0
  %127 = vmatpush1.msra.mxu0 0.0
  %128 = vmatprep.subr.mxu0 0.0
  %129 = vmatpush1.msra.mxu0 0.0
  %130 = vmatprep.subr.mxu0 0.0
  %131 = vmatpush1.msra.mxu0 0.0
  %132 = vmatprep.subr.mxu0 0.0
  %133 = vmatpush1.msra.mxu0 0.0
  %134 = vmatprep.subr.mxu0 0.0
  %135 = vmatpush1.msra.mxu0 0.0
  %136 = vmatprep.subr.mxu0 0.0
  %137 = vmatpush1.msra.mxu0 0.0
  %138 = vmatprep.subr.mxu0 0.0
  %139 = vmatpush1.msra.mxu0 0.0
  %140 = vmatprep.subr.mxu0 0.0
  %141 = vmatpush1.msra.mxu0 0.0
  %142 = vmatprep.subr.mxu0 0.0
  %143 = vmatpush1.msra.mxu0 0.0
  %144 = vmatprep.subr.mxu0 0.0
  %145 = vmatpush1.msra.mxu0 0.0
  %146 = vmatprep.subr.mxu0 0.0
  %147 = vmatpush1.msra.mxu0 0.0
  %148 = vmatprep.subr.mxu0 0.0
  %149 = vmatpush1.msra.mxu0 0.0
  %150 = vmatprep.subr.mxu0 0.0
  %151 = vmatpush1.msra.mxu0 0.0
  %152 = vmatprep.subr.mxu0 0.0
  %153 = vmatpush1.msra.mxu0 0.0
  %154 = vmatprep.subr.mxu0 0.0
  %155 = vmatpush1.msra.mxu0 0.0
  %156 = vmatprep.subr.mxu0 0.0
  %157 = vmatpush1.msra.mxu0 0.0
  %158 = vmatprep.subr.mxu0 0.0
  %159 = vmatpush1.msra.mxu0 0.0
  %160 = vmatprep.subr.mxu0 0.0
  %161 = vmatpush1.msra.mxu0 0.0
  %162 = vmatprep.subr.mxu0 0.0
  %163 = vmatpush1.msra.mxu0 0.0
  %164 = vmatprep.subr.mxu0 0.0
  %165 = vmatpush1.msra.mxu0 0.0
  %166 = vmatprep.subr.mxu0 0.0
  %167 = vmatpush1.msra.mxu0 0.0
  %168 = vmatprep.subr.mxu0 0.0
  %169 = vmatpush1.msra.mxu0 0.0
  %170 = vmatprep.subr.mxu0 0.0
  %171 = vmatpush1.msra.mxu0 0.0
  %172 = vmatprep.subr.mxu0 0.0
  %173 = vmatpush1.msra.mxu0 0.0
  %174 = vmatprep.subr.mxu0 0.0
  %175 = vmatpush1.msra.mxu0 0.0
  %176 = vmatprep.subr.mxu0 0.0
  %177 = vmatpush1.msra.mxu0 0.0
  %178 = vmatprep.subr.mxu0 0.0
  %179 = vmatpush1.msra.mxu0 0.0
  %180 = vmatprep.mubr.f32.mxu0 0.0
  %181 = vmatmul.mubr.f32.gmra.mrb[0].mxu0 %v27
  %v182 = vpop.f32.mrb[0].mxu0
  %v183 = vadd.f32 0.0, %v182
  %v184 = vpop.f32.mrb[0].mxu0
  %185 = vdwg.mxu0
  %186 = vadd.xlane.f32.xlu0 %v183
  %v187 = vpop.xlane.xlu0 %186
  %v188 = vadd.f32 %v105, %v187
  %v189 = vmul.f32 %v183, %v183
  %190 = vadd.xlane.f32.xlu0 %v189
  %v191 = vpop.xlane.xlu0 %190
  %v192 = vadd.f32 %v109, %v191
  %v193 = vld [vmem:[%s2] sm:$0xff]
  %v194 = vadd.f32 %v193, %v188
  %vm195 = vcmask 7168
  %196 = vst.msk [vmem:[%s2] sm:$0xff] %vm195, %v194
  %v197 = vld [vmem:[%s3] sm:$0xff]
  %v198 = vadd.f32 %v197, %v192
  %199 = vst.msk [vmem:[%s3] sm:$0xff] %vm195, %v198
  // Predicated region
  $region14: #{factorized_reduce.2} parent=0 // pred_check
    _
  $region15: #{factorized_reduce.2} parent=0 // pred_check_branch
    %201 = sbr.rel (0) target = $region17
  $region16: #{factorized_reduce.2} parent=0 // pred_region
    _
  $region17: #{factorized_reduce.2} parent=0 // pred_fallthru
    _
  // Predicated region
  $region18: #{factorized_reduce.2} parent=0 // pred_check
    _
  $region19: #{factorized_reduce.2} parent=0 // pred_check_branch
    %203 = sbr.rel (0) target = $region21
  $region20: #{factorized_reduce.2} parent=0 // pred_region
    _
  $region21: #{factorized_reduce.2} parent=0 // pred_fallthru
    _
  // Predicated region
  $region22: #{factorized_reduce.2} parent=0 // pred_check
    _
  $region23: #{factorized_reduce.2} parent=0 // pred_check_branch
    %205 = sbr.rel (0) target = $region25
  $region24: #{factorized_reduce.2} parent=0 // pred_region
    _
  $region25: #{factorized_reduce.2} parent=0 // pred_fallthru
    _
  // Predicated region
  $region26: #{factorized_reduce.2} parent=0 // pred_check
    _
  $region27: #{factorized_reduce.2} parent=0 // pred_check_branch
    %207 = sbr.rel (0) target = $region29
  $region28: #{factorized_reduce.2} parent=0 // pred_region
    _
  $region29: #{factorized_reduce.2} parent=0 // pred_fallthru
    _

// kernel: factorized_reduce.3
$region0: #{factorized_reduce.3}
  #allocation0 [shape = 'u32[]', space=smem, size = 0x4, offset = 0x4, fixed_abs, tag = 'smem constant byte address 0x4 - core index']
  #allocation1 [shape = 'u32[144,128]{1,0:T(1,128)}', space=vmem, size = 0x12000, scoped, tag = 'internal scratch']
  %s0 = inlined_call_operand.vmem [shape: f32[2,4,128], index: 0, kind: input, shape index: {}]
  %s1 = inlined_call_operand.vmem [shape: f32[8,4], index: 1, kind: input, shape index: {}]
  %s2 = inlined_call_operand.vmem [shape: f32[8,1], index: 2, kind: input, shape index: {}]
  %s3 = inlined_call_operand.vmem [shape: f32[8,1], index: 3, kind: input, shape index: {}]
  %s4 = inlined_call_operand.vmem [shape: f32[2,8,128], index: 4, kind: output, shape index: {}]
  %s5 = sld [smem:[#allocation0]]
  $region26: #{factorized_reduce.3} parent=0
    _
  %s7 = ssub.s32 1, %s5
  %s8 = scalar_select 0, %s7, %s5
  // Predicated region
  $region2: #{factorized_reduce.3} parent=0 // pred_check
    _
  $region3: #{factorized_reduce.3} parent=0 // pred_check_branch
    %10 = sbr.rel (0) target = $region5
  $region4: #{factorized_reduce.3} parent=0 // pred_region
    _
  $region5: #{factorized_reduce.3} parent=0 // pred_fallthru
    _
  // Predicated region
  $region6: #{factorized_reduce.3} parent=0 // pred_check
    _
  $region7: #{factorized_reduce.3} parent=0 // pred_check_branch
    %12 = sbr.rel (0) target = $region9
  $region8: #{factorized_reduce.3} parent=0 // pred_region
    _
  $region9: #{factorized_reduce.3} parent=0 // pred_fallthru
    _
  // Predicated region
  $region10: #{factorized_reduce.3} parent=0 // pred_check
    _
  $region11: #{factorized_reduce.3} parent=0 // pred_check_branch
    %14 = sbr.rel (0) target = $region13
  $region12: #{factorized_reduce.3} parent=0 // pred_region
    _
  $region13: #{factorized_reduce.3} parent=0 // pred_fallthru
    _
  // Predicated region
  $region14: #{factorized_reduce.3} parent=0 // pred_check
    _
  $region15: #{factorized_reduce.3} parent=0 // pred_check_branch
    %16 = sbr.rel (0) target = $region17
  $region16: #{factorized_reduce.3} parent=0 // pred_region
    _
  $region17: #{factorized_reduce.3} parent=0 // pred_fallthru
    _
  %v17 = vld [vmem:[%s1] sm:$0xff]
  %v18 = vld [vmem:[%s2] sm:$0xff]
  %v19 = vld [vmem:[%s3] sm:$0xff]
  %v20 = vld [vmem:[%s0] sm:$0xf]
  %v21 = vmax.f32 %v20, 0.0
  %vm22 = vcmask 31744
  %v24 = vsel %vm22, %v17, 0
  %vm26 = vcmask 1043456
  %v28 = vsel %vm26, %v21, 0
  %30 = vmatprep.subr.mxu0 0.0
  %31 = vmatpush1.msra.mxu0 %v28
  %32 = vmatprep.subr.mxu0 0.0
  %33 = vmatpush1.msra.mxu0 0.0
  %34 = vmatprep.subr.mxu0 0.0
  %35 = vmatpush1.msra.mxu0 0.0
  %36 = vmatprep.subr.mxu0 0.0
  %37 = vmatpush1.msra.mxu0 0.0
  %38 = vmatprep.subr.mxu0 0.0
  %39 = vmatpush1.msra.mxu0 0.0
  %40 = vmatprep.subr.mxu0 0.0
  %41 = vmatpush1.msra.mxu0 0.0
  %42 = vmatprep.subr.mxu0 0.0
  %43 = vmatpush1.msra.mxu0 0.0
  %44 = vmatprep.subr.mxu0 0.0
  %45 = vmatpush1.msra.mxu0 0.0
  %46 = vmatprep.subr.mxu0 0.0
  %47 = vmatpush1.msra.mxu0 0.0
  %48 = vmatprep.subr.mxu0 0.0
  %49 = vmatpush1.msra.mxu0 0.0
  %50 = vmatprep.subr.mxu0 0.0
  %51 = vmatpush1.msra.mxu0 0.0
  %52 = vmatprep.subr.mxu0 0.0
  %53 = vmatpush1.msra.mxu0 0.0
  %54 = vmatprep.subr.mxu0 0.0
  %55 = vmatpush1.msra.mxu0 0.0
  %56 = vmatprep.subr.mxu0 0.0
  %57 = vmatpush1.msra.mxu0 0.0
  %58 = vmatprep.subr.mxu0 0.0
  %59 = vmatpush1.msra.mxu0 0.0
  %60 = vmatprep.subr.mxu0 0.0
  %61 = vmatpush1.msra.mxu0 0.0
  %62 = vmatprep.subr.mxu0 0.0
  %63 = vmatpush1.msra.mxu0 0.0
  %64 = vmatprep.subr.mxu0 0.0
  %65 = vmatpush1.msra.mxu0 0.0
  %66 = vmatprep.subr.mxu0 0.0
  %67 = vmatpush1.msra.mxu0 0.0
  %68 = vmatprep.subr.mxu0 0.0
  %69 = vmatpush1.msra.mxu0 0.0
  %70 = vmatprep.subr.mxu0 0.0
  %71 = vmatpush1.msra.mxu0 0.0
  %72 = vmatprep.subr.mxu0 0.0
  %73 = vmatpush1.msra.mxu0 0.0
  %74 = vmatprep.subr.mxu0 0.0
  %75 = vmatpush1.msra.mxu0 0.0
  %76 = vmatprep.subr.mxu0 0.0
  %77 = vmatpush1.msra.mxu0 0.0
  %78 = vmatprep.subr.mxu0 0.0
  %79 = vmatpush1.msra.mxu0 0.0
  %80 = vmatprep.subr.mxu0 0.0
  %81 = vmatpush1.msra.mxu0 0.0
  %82 = vmatprep.subr.mxu0 0.0
  %83 = vmatpush1.msra.mxu0 0.0
  %84 = vmatprep.subr.mxu0 0.0
  %85 = vmatpush1.msra.mxu0 0.0
  %86 = vmatprep.subr.mxu0 0.0
  %87 = vmatpush1.msra.mxu0 0.0
  %88 = vmatprep.subr.mxu0 0.0
  %89 = vmatpush1.msra.mxu0 0.0
  %90 = vmatprep.subr.mxu0 0.0
  %91 = vmatpush1.msra.mxu0 0.0
  %92 = vmatprep.subr.mxu0 0.0
  %93 = vmatpush1.msra.mxu0 0.0
  %94 = vmatprep.mubr.f32.mxu0 0.0
  %95 = vmatmul.mubr.f32.gmra.mrb[0].mxu0 %v24
  %v96 = vpop.f32.mrb[0].mxu0
  %v97 = vadd.f32 0.0, %v96
  %v98 = vpop.f32.mrb[0].mxu0
  %99 = vdwg.mxu0
  %101 = vset.pattern.permute.xlu0 0
  %102 = vperm.xlu0 %101, %v18
  %v103 = vpop.permute.xlu0 %102
  %v105 = vmul.f32 %v97, %v103
  %107 = vset.pattern.permute.xlu0 0
  %108 = vperm.xlu0 %107, %v19
  %v109 = vpop.permute.xlu0 %108
  %v111 = vadd.f32 %v105, %v109
  %112 = vst [vmem:[%s4] sm:$0xff] %v111
  %s113 = scalar_lea.vmem %s0, 4
  %v114 = vld [vmem:[%s113] sm:$0xf]
  %v115 = vmax.f32 %v114, 0.0
  %v117 = vsel %vm26, %v115, 0
  %119 = vmatprep.subr.mxu0 0.0
  %120 = vmatpush1.msra.mxu0 %v117
  %121 = vmatprep.subr.mxu0 0.0
  %122 = vmatpush1.msra.mxu0 0.0
  %123 = vmatprep.subr.mxu0 0.0
  %124 = vmatpush1.msra.mxu0 0.0
  %125 = vmatprep.subr.mxu0 0.0
  %126 = vmatpush1.msra.mxu0 0.0
  %127 = vmatprep.subr.mxu0 0.0
  %128 = vmatpush1.msra.mxu0 0.0
  %129 = vmatprep.subr.mxu0 0.0
  %130 = vmatpush1.msra.mxu0 0.0
  %131 = vmatprep.subr.mxu0 0.0
  %132 = vmatpush1.msra.mxu0 0.0
  %133 = vmatprep.subr.mxu0 0.0
  %134 = vmatpush1.msra.mxu0 0.0
  %135 = vmatprep.subr.mxu0 0.0
  %136 = vmatpush1.msra.mxu0 0.0
  %137 = vmatprep.subr.mxu0 0.0
  %138 = vmatpush1.msra.mxu0 0.0
  %139 = vmatprep.subr.mxu0 0.0
  %140 = vmatpush1.msra.mxu0 0.0
  %141 = vmatprep.subr.mxu0 0.0
  %142 = vmatpush1.msra.mxu0 0.0
  %143 = vmatprep.subr.mxu0 0.0
  %144 = vmatpush1.msra.mxu0 0.0
  %145 = vmatprep.subr.mxu0 0.0
  %146 = vmatpush1.msra.mxu0 0.0
  %147 = vmatprep.subr.mxu0 0.0
  %148 = vmatpush1.msra.mxu0 0.0
  %149 = vmatprep.subr.mxu0 0.0
  %150 = vmatpush1.msra.mxu0 0.0
  %151 = vmatprep.subr.mxu0 0.0
  %152 = vmatpush1.msra.mxu0 0.0
  %153 = vmatprep.subr.mxu0 0.0
  %154 = vmatpush1.msra.mxu0 0.0
  %155 = vmatprep.subr.mxu0 0.0
  %156 = vmatpush1.msra.mxu0 0.0
  %157 = vmatprep.subr.mxu0 0.0
  %158 = vmatpush1.msra.mxu0 0.0
  %159 = vmatprep.subr.mxu0 0.0
  %160 = vmatpush1.msra.mxu0 0.0
  %161 = vmatprep.subr.mxu0 0.0
  %162 = vmatpush1.msra.mxu0 0.0
  %163 = vmatprep.subr.mxu0 0.0
  %164 = vmatpush1.msra.mxu0 0.0
  %165 = vmatprep.subr.mxu0 0.0
  %166 = vmatpush1.msra.mxu0 0.0
  %167 = vmatprep.subr.mxu0 0.0
  %168 = vmatpush1.msra.mxu0 0.0
  %169 = vmatprep.subr.mxu0 0.0
  %170 = vmatpush1.msra.mxu0 0.0
  %171 = vmatprep.subr.mxu0 0.0
  %172 = vmatpush1.msra.mxu0 0.0
  %173 = vmatprep.subr.mxu0 0.0
  %174 = vmatpush1.msra.mxu0 0.0
  %175 = vmatprep.subr.mxu0 0.0
  %176 = vmatpush1.msra.mxu0 0.0
  %177 = vmatprep.subr.mxu0 0.0
  %178 = vmatpush1.msra.mxu0 0.0
  %179 = vmatprep.subr.mxu0 0.0
  %180 = vmatpush1.msra.mxu0 0.0
  %181 = vmatprep.subr.mxu0 0.0
  %182 = vmatpush1.msra.mxu0 0.0
  %183 = vmatprep.mubr.f32.mxu0 0.0
  %184 = vmatmul.mubr.f32.gmra.mrb[0].mxu0 %v24
  %v185 = vpop.f32.mrb[0].mxu0
  %v186 = vadd.f32 0.0, %v185
  %v187 = vpop.f32.mrb[0].mxu0
  %188 = vdwg.mxu0
  %v189 = vmul.f32 %v186, %v103
  %v190 = vadd.f32 %v189, %v109
  %s191 = scalar_lea.vmem %s4, 8
  %192 = vst [vmem:[%s191] sm:$0xff] %v190
  // Predicated region
  $region18: #{factorized_reduce.3} parent=0 // pred_check
    _
  $region19: #{factorized_reduce.3} parent=0 // pred_check_branch
    %194 = sbr.rel (0) target = $region21
  $region20: #{factorized_reduce.3} parent=0 // pred_region
    _
  $region21: #{factorized_reduce.3} parent=0 // pred_fallthru
    _
  // Predicated region
  $region22: #{factorized_reduce.3} parent=0 // pred_check
    _
  $region23: #{factorized_reduce.3} parent=0 // pred_check_branch
    %196 = sbr.rel (0) target = $region25
  $region24: #{factorized_reduce.3} parent=0 // pred_region
    _
  $region25: #{factorized_reduce.3} parent=0 // pred_fallthru
    _

</llo_original>
